<compile_context>
chip_gen: v7x
topology: tpu7x:2x2x1
jax: 0.10.0
libtpu: 0.0.40
codegen_flags: <defaults>
</compile_context>

<pallas_src>
import functools

import jax
import jax.numpy as jnp
from jax.experimental import pallas as pl
from jax.experimental.pallas import tpu as pltpu

BN_EPS = 1e-5
_VMEM_LIMIT = 32 * 1024 * 1024        # safe on v5e/v6e (128 MiB) and v7x (64 MiB/TC)
# TODO(synk): on v5e/v6e the cap can be raised to 64-96 MiB for deeper buffering
#             (pl.Buffered(3) on the neighbour slab) to hide v5e's slower HBM.
# TODO(synk): on v7x try pltpu.CORE_PARALLEL on the row-tile grid axis to engage the
#             second TensorCore; kept plain "parallel" here for portability.
# TODO(synk): conv/graph matmul operands could be cast to bf16 (f32 accumulate) on
#             v6e/v7x to halve HBM/VMEM traffic; kept f32 for parity with the fp32
#             PyTorch reference (bf16 is applied only to the kNN distance matmul,
#             whose output feeds top-k index selection only).

# Representative subset of the SGAS gcn_point search space.
# TODO(synk): original PRIMITIVES also contain 'gat','semi_gcn','gin','sage','res_sage';
#             their exact OPS definitions are not provided, so they are omitted here.
PRIMITIVES = ['none', 'skip_connect', 'conv_1x1', 'edge_conv', 'mr_conv']


# ---------------------------------------------------------------------------
# small helpers
# ---------------------------------------------------------------------------
def _round_up(x, m):
    return ((x + m - 1) // m) * m


def _pick_row_tile(m, target):
    """Row tile: multiple of 8, capped at `target` (target is a multiple of 8)."""
    return min(_round_up(m, 8), target)


def _cparams(*sem):
    return pltpu.CompilerParams(dimension_semantics=tuple(sem),
                                vmem_limit_bytes=_VMEM_LIMIT)


def _pad_rows(x, rows):
    m = x.shape[0]
    return x if rows == m else jnp.pad(x, ((0, rows - m), (0, 0)))


def _fold_bn(partials, count, gamma, beta):
    """partials: [nT, 2, Cout] (sum, sumsq). Returns folded (scale, shift) [1, Cout]."""
    # TODO(synk): E[y^2]-E[y]^2 can cancel for large-magnitude activations; switch to a
    #             shifted / Welford-style combine if activations grow.
    s = jnp.sum(partials[:, 0, :], axis=0)
    sq = jnp.sum(partials[:, 1, :], axis=0)
    mean = s / count
    var = jnp.maximum(sq / count - mean * mean, 0.0)      # biased var (train-mode BN)
    scale = gamma.reshape(1, -1) * jax.lax.rsqrt(var + BN_EPS).reshape(1, -1)
    shift = beta.reshape(1, -1) - mean.reshape(1, -1) * scale
    return scale, shift


# ---------------------------------------------------------------------------
# Pallas kernels: linear (1x1 conv) + BN + ReLU
#   pass 1: matmul, store pre-BN y + per-tile (sum, sumsq) partials
#   pass 2: VPU-only folded BN FMA + ReLU   (no matmul recompute)
# ---------------------------------------------------------------------------
def _lin_stats_kernel(x_ref, w_ref, y_ref, part_ref):
    y = jnp.dot(x_ref[...], w_ref[...], preferred_element_type=jnp.float32)
    y_ref[...] = y
    part_ref[0, 0:1, :] = jnp.sum(y, axis=0, keepdims=True)
    part_ref[0, 1:2, :] = jnp.sum(y * y, axis=0, keepdims=True)


def _bn_relu_apply_kernel(y_ref, scale_ref, shift_ref, o_ref):
    o_ref[...] = jnp.maximum(y_ref[...] * scale_ref[...] + shift_ref[...], 0.0)


def linear_bn_relu(x, w, gamma, beta):
    """BasicConv([Cin, Cout], 'relu', 'batch') on flattened [M, Cin] input.

    Conv bias omitted: with train-mode (batch-statistics) BatchNorm a bias is exactly
    cancelled, so semantics are unchanged.  Zero-padded rows contribute 0 to both sum
    and sumsq, so BN stats stay exact (divide by true M).
    """
    M, Cin = x.shape
    Cout = w.shape[1]
    tile = _pick_row_tile(M, 2048)
    Mp = _round_up(M, tile)
    xp = _pad_rows(x, Mp)
    nT = Mp // tile

    y_pre, partials = pl.pallas_call(
        _lin_stats_kernel,
        out_shape=(jax.ShapeDtypeStruct((Mp, Cout), jnp.float32),
                   jax.ShapeDtypeStruct((nT, 2, Cout), jnp.float32)),
        grid=(nT,),
        in_specs=[pl.BlockSpec((tile, Cin), lambda i: (i, 0)),
                  pl.BlockSpec((Cin, Cout), lambda i: (0, 0))],
        out_specs=(pl.BlockSpec((tile, Cout), lambda i: (i, 0)),
                   pl.BlockSpec((1, 2, Cout), lambda i: (i, 0, 0))),
        compiler_params=_cparams("parallel"),
    )(xp, w)

    scale, shift = _fold_bn(partials, M, gamma, beta)

    y = pl.pallas_call(
        _bn_relu_apply_kernel,
        out_shape=jax.ShapeDtypeStruct((Mp, Cout), jnp.float32),
        grid=(nT,),
        in_specs=[pl.BlockSpec((tile, Cout), lambda i: (i, 0)),
                  pl.BlockSpec((1, Cout), lambda i: (0, 0)),
                  pl.BlockSpec((1, Cout), lambda i: (0, 0))],
        out_specs=pl.BlockSpec((tile, Cout), lambda i: (i, 0)),
        compiler_params=_cparams("parallel"),
    )(y_pre, scale, shift)
    return y[:M]


# ---------------------------------------------------------------------------
# Pallas kernels: fused graph convs (EdgeConv + MRConv + conv_1x1), stacked outputs
# ---------------------------------------------------------------------------
@functools.lru_cache(maxsize=None)
def _make_graph_stats_kernel(do_edge, do_mr, do_lin):
    n_w = 2 * int(do_edge) + 2 * int(do_mr) + int(do_lin)

    def kernel(xi_ref, xj_ref, *refs):
        w_refs = refs[:n_w]
        ypre_ref, part_ref = refs[n_w], refs[n_w + 1]

        xi = xi_ref[...]                                     # [T, C]
        xj = xj_ref[...]                                     # [K, T, C]
        d = xj - xi[None, :, :]                              # [K, T, C]
        K, T, C = d.shape

        cols = []
        row = 0
        wi = 0
        if do_edge:
            we_top, we_bot = w_refs[wi], w_refs[wi + 1]
            wi += 2
            base = jnp.dot(xi, we_top[...], preferred_element_type=jnp.float32)   # [T, Cout]
            # one batched matmul over all K neighbours instead of K tiny MXU ops
            yb = jnp.dot(d.reshape(K * T, C), we_bot[...],
                         preferred_element_type=jnp.float32)                       # [K*T, Cout]
            yk = yb.reshape(K, T, -1) + base[None]                                 # [K, T, Cout]
            cols.append(jnp.max(yk, axis=0))
            cols.append(jnp.min(yk, axis=0))
            part_ref[0, row:row + 1, :] = jnp.sum(jnp.sum(yk, axis=0),
                                                  axis=0, keepdims=True)
            part_ref[0, row + 1:row + 2, :] = jnp.sum(jnp.sum(yk * yk, axis=0),
                                                      axis=0, keepdims=True)
            row += 2
        if do_mr:
            wm_top, wm_bot = w_refs[wi], w_refs[wi + 1]
            wi += 2
            agg = jnp.max(d, axis=0)                                               # [T, C]
            ym = (jnp.dot(xi, wm_top[...], preferred_element_type=jnp.float32)
                  + jnp.dot(agg, wm_bot[...], preferred_element_type=jnp.float32))
            cols.append(ym)
            part_ref[0, row:row + 1, :] = jnp.sum(ym, axis=0, keepdims=True)
            part_ref[0, row + 1:row + 2, :] = jnp.sum(ym * ym, axis=0, keepdims=True)
            row += 2
        if do_lin:
            wl = w_refs[wi]
            yl = jnp.dot(xi, wl[...], preferred_element_type=jnp.float32)
            cols.append(yl)
            part_ref[0, row:row + 1, :] = jnp.sum(yl, axis=0, keepdims=True)
            part_ref[0, row + 1:row + 2, :] = jnp.sum(yl * yl, axis=0, keepdims=True)

        ypre_ref[...] = cols[0] if len(cols) == 1 else jnp.concatenate(cols, axis=1)

    return kernel


@functools.lru_cache(maxsize=None)
def _make_graph_apply_kernel(do_edge, do_mr, do_lin):
    n_ss = 2 * (int(do_edge) + int(do_mr) + int(do_lin))

    def kernel(ypre_ref, *refs):
        ss = refs[:n_ss]
        o_ref = refs[n_ss]
        yp = ypre_ref[...]
        outs = []
        col = 0
        si = 0
        if do_edge:
            e_scale, e_shift = ss[si][...], ss[si + 1][...]
            si += 2
            Cout = e_scale.shape[-1]
            emax = yp[:, col:col + Cout]
            emin = yp[:, col + Cout:col + 2 * Cout]
            col += 2 * Cout
            # relu(scale*y+shift) is monotone in y per channel (sign of scale), so
            # max_k after BN+ReLU == BN+ReLU of (max_k y if scale>=0 else min_k y).
            ysel = jnp.where(e_scale >= 0.0, emax, emin)
            outs.append(jnp.maximum(ysel * e_scale + e_shift, 0.0))
        if do_mr:
            m_scale, m_shift = ss[si][...], ss[si + 1][...]
            si += 2
            Cout = m_scale.shape[-1]
            ym = yp[:, col:col + Cout]
            col += Cout
            outs.append(jnp.maximum(ym * m_scale + m_shift, 0.0))
        if do_lin:
            l_scale, l_shift = ss[si][...], ss[si + 1][...]
            si += 2
            Cout = l_scale.shape[-1]
            yl = yp[:, col:col + Cout]
            col += Cout
            outs.append(jnp.maximum(yl * l_scale + l_shift, 0.0))
        o_ref[...] = outs[0] if len(outs) == 1 else jnp.concatenate(outs, axis=1)

    return kernel


def _gather_neighbors_kmc(x, nn_idx, rows):
    """x: [B,N,C], nn_idx: [B,N,K] -> [K, rows, C] with zero padding beyond B*N.

    Layout [K, M, C] so the kernel loads contiguous per-tile 3-D slabs instead of
    sublane-strided [:, k, :] slices.
    """
    # TODO(synk): the gather itself is XLA glue; a scalar-prefetch (nn_idx in SMEM) +
    #             manual pltpu.make_async_copy in-kernel gather would keep the
    #             K-expanded copy VMEM-only and remove this HBM round trip.
    B, N, C = x.shape
    K = nn_idx.shape[-1]
    g = jax.vmap(lambda xb, ib: xb[ib])(x, nn_idx)            # [B, N, K, C]
    g = jnp.transpose(g, (2, 0, 1, 3)).reshape(K, B * N, C)   # [K, M, C]
    if rows > B * N:
        g = jnp.pad(g, ((0, 0), (0, rows - B * N), (0, 0)))
    return g


def graph_convs_fused(x, nn_idx, edge_params=None, mr_params=None, lin_params=None):
    """Fused EdgeConv / MRConv / conv_1x1 on shared x_i / gathered x_j.

    Returns a dict with any of 'edge', 'mr', 'lin' mapping to [B, N, Cout] results.
    All matmuls + BN partial stats happen in one Pallas pass; the second pass is a
    VPU-only folded-BN FMA + ReLU (plus the edge max/min selection).
    """
    do_edge = edge_params is not None
    do_mr = mr_params is not None
    do_lin = lin_params is not None
    assert do_edge or do_mr, "conv_1x1-only path should use linear_bn_relu"

    B, N, C = x.shape
    K = nn_idx.shape[-1]
    M = B * N
    tile = _pick_row_tile(M, 1024)
    Mp = _round_up(M, tile)
    nT = Mp // tile

    xi = _pad_rows(x.reshape(M, C), Mp)                       # [Mp, C]
    xj = _gather_neighbors_kmc(x, nn_idx, Mp)                 # [K, Mp, C], gathered ONCE

    w_in = []
    Cout = None
    if do_edge:
        w = edge_params['w']
        Cout = w.shape[1]
        w_in += [w[:C], w[C:]]                                # split weight, drop concat
    if do_mr:
        w = mr_params['w']
        assert Cout is None or w.shape[1] == Cout
        Cout = w.shape[1]
        w_in += [w[:C], w[C:]]
    if do_lin:
        w = lin_params['w']
        assert w.shape[0] == C and (Cout is None or w.shape[1] == Cout)
        Cout = w.shape[1]
        w_in += [w]

    n_ops = int(do_edge) + int(do_mr) + int(do_lin)
    width = (2 * Cout if do_edge else 0) + (Cout if do_mr else 0) + (Cout if do_lin else 0)
    nrows = 2 * n_ops
    w_specs = [pl.BlockSpec(wi.shape, lambda i: (0, 0)) for wi in w_in]

    ypre, partials = pl.pallas_call(
        _make_graph_stats_kernel(do_edge, do_mr, do_lin),
        out_shape=(jax.ShapeDtypeStruct((Mp, width), jnp.float32),
                   jax.ShapeDtypeStruct((nT, nrows, Cout), jnp.float32)),
        grid=(nT,),
        in_specs=[pl.BlockSpec((tile, C), lambda i: (i, 0)),
                  pl.BlockSpec((K, tile, C), lambda i: (0, i, 0))] + w_specs,
        out_specs=(pl.BlockSpec((tile, width), lambda i: (i, 0)),
                   pl.BlockSpec((1, nrows, Cout), lambda i: (i, 0, 0))),
        compiler_params=_cparams("parallel"),
    )(xi, xj, *w_in)

    ss_in = []
    row = 0
    if do_edge:
        sc, sh = _fold_bn(partials[:, row:row + 2, :], M * K,
                          edge_params['g'], edge_params['b'])
        ss_in += [sc, sh]
        row += 2
    if do_mr:
        sc, sh = _fold_bn(partials[:, row:row + 2, :], M, mr_params['g'], mr_params['b'])
        ss_in += [sc, sh]
        row += 2
    if do_lin:
        sc, sh = _fold_bn(partials[:, row:row + 2, :], M, lin_params['g'], lin_params['b'])
        ss_in += [sc, sh]
        row += 2

    out_w = n_ops * Cout
    y = pl.pallas_call(
        _make_graph_apply_kernel(do_edge, do_mr, do_lin),
        out_shape=jax.ShapeDtypeStruct((Mp, out_w), jnp.float32),
        grid=(nT,),
        in_specs=[pl.BlockSpec((tile, width), lambda i: (i, 0))]
                 + [pl.BlockSpec((1, Cout), lambda i: (0, 0)) for _ in ss_in],
        out_specs=pl.BlockSpec((tile, out_w), lambda i: (i, 0)),
        compiler_params=_cparams("parallel"),
    )(ypre, *ss_in)

    y = y[:M]
    res = {}
    col = 0
    if do_edge:
        res['edge'] = y[:, col:col + Cout].reshape(B, N, Cout)
        col += Cout
    if do_mr:
        res['mr'] = y[:, col:col + Cout].reshape(B, N, Cout)
        col += Cout
    if do_lin:
        res['lin'] = y[:, col:col + Cout].reshape(B, N, Cout)
    return res


# ---------------------------------------------------------------------------
# Pallas kernel: -||x_i - x_j||^2 pairwise distance, tiled over (padded) query rows
# ---------------------------------------------------------------------------
def _neg_pdist_kernel(xq_ref, xk_ref, sqk_ref, o_ref):
    xq = xq_ref[0]                                            # [TQ, C] bf16
    xk = xk_ref[0]                                            # [N, C]  bf16
    inner = jax.lax.dot_general(xq, xk, (((1,), (1,)), ((), ())),
                                preferred_element_type=jnp.float32)    # [TQ, N]
    xq32 = xq.astype(jnp.float32)
    sq_q = jnp.sum(xq32 * xq32, axis=-1, keepdims=True)       # [TQ, 1]
    o_ref[0] = 2.0 * inner - sq_q - sqk_ref[0]                # sqk_ref[0]: [1, N]


def neg_pairwise_dist(x):
    """bf16 operands / f32 accumulation; the result only feeds top-k index selection,
    so near-tie reorderings are an accepted (documented) tolerance."""
    B, N, C = x.shape
    TQ = min(_round_up(N, 8), 256)          # query tile; keys stay resident per step
    Nq = _round_up(N, TQ)                   # pad queries -> no divisor constraint on N
    nQT = Nq // TQ

    xk = x.astype(jnp.bfloat16)
    xq = xk if Nq == N else jnp.pad(xk, ((0, 0), (0, Nq - N), (0, 0)))
    xk32 = xk.astype(jnp.float32)
    sq_k = jnp.sum(xk32 * xk32, axis=-1)[:, None, :]          # [B, 1, N], hoisted

    out = pl.pallas_call(
        _neg_pdist_kernel,
        out_shape=jax.ShapeDtypeStruct((B, Nq, N), jnp.float32),
        grid=(B, nQT),
        in_specs=[pl.BlockSpec((1, TQ, C), lambda b, q: (b, q, 0)),
                  pl.BlockSpec((1, N, C), lambda b, q: (b, 0, 0)),
                  pl.BlockSpec((1, 1, N), lambda b, q: (b, 0, 0))],
        out_specs=pl.BlockSpec((1, TQ, N), lambda b, q: (b, q, 0)),
        compiler_params=_cparams("parallel", "parallel"),
    )(xq, xk, sq_k)
    # TODO(synk): for very large N, fuse a running top-k over key tiles to avoid
    #             materializing the full [B, N, N] distance matrix.
    return out if Nq == N else out[:, :N, :]


# ---------------------------------------------------------------------------
# Parameter construction (deterministic, synthetic)
# ---------------------------------------------------------------------------
def _glorot(key, cin, cout):
    limit = (6.0 / (cin + cout)) ** 0.5
    return jax.random.uniform(key, (cin, cout), jnp.float32, -limit, limit)


def _basic_conv_params(key, cin, cout):
    return {'w': _glorot(key, cin, cout),
            'g': jnp.ones((1, cout), jnp.float32),
            'b': jnp.zeros((1, cout), jnp.float32)}


def _init_op_params(key, prim, C):
    if prim in ('none', 'skip_connect'):
        return None
    cin = C if prim == 'conv_1x1' else 2 * C
    return _basic_conv_params(key, cin, C)


# ---------------------------------------------------------------------------
# Simple ops (graph ops go through graph_convs_fused)
# ---------------------------------------------------------------------------
def _op_none(params, x, x_0, nn_idx):
    return jnp.zeros_like(x)


def _op_skip(params, x, x_0, nn_idx):
    return x


def _op_conv1x1(params, x, x_0, nn_idx):
    B, N, C = x.shape
    y = linear_bn_relu(x.reshape(B * N, C), params['w'], params['g'], params['b'])
    return y.reshape(B, N, -1)


_OP_FNS = {'none': _op_none, 'skip_connect': _op_skip, 'conv_1x1': _op_conv1x1}


# ---------------------------------------------------------------------------
# DilatedKnn2d (dense kNN graph on the raw s0 features)
# ---------------------------------------------------------------------------
def dilated_knn_graph(x, k, dilation):
    neg = neg_pairwise_dist(x)                                # Pallas: [B, N, N]
    _, nn_idx = jax.lax.top_k(neg, k * dilation)              # glue: top-k selection
    return nn_idx[:, :, ::dilation]                           # [B, N, k]


def _basic_conv(x, params):
    B, N, Cin = x.shape
    y = linear_bn_relu(x.reshape(B * N, Cin), params['w'], params['g'], params['b'])
    return y.reshape(B, N, -1)


# ---------------------------------------------------------------------------
# MixedOp / Cell (mirrors the PyTorch control flow exactly)
# ---------------------------------------------------------------------------
class MixedOp:
    def __init__(self, key, C, stride, layer, switch, flag, selected_idx):
        self._prims, self._params = [], []
        if flag:
            keys = jax.random.split(key, len(switch))
            for i in range(len(switch)):
                if switch[i]:
                    p = PRIMITIVES[i]
                    self._prims.append(p)
                    self._params.append(_init_op_params(keys[i], p, C))
        else:
            p = PRIMITIVES[selected_idx]
            self._prims.append(p)
            self._params.append(_init_op_params(key, p, C))

    def __call__(self, x, edge_index, weights, selected_idx, x_0):
        if selected_idx is None:
            prm_by_name = dict(zip(self._prims, self._params))
            want_graph = [p for p in self._prims if p in ('edge_conv', 'mr_conv')]
            fuse_lin = bool(want_graph) and ('conv_1x1' in self._prims)
            graph_out = {}
            if want_graph:
                # shared gather + shared x_i read + lane-stacked outputs for all
                # graph/linear primitives of this MixedOp edge
                graph_out = graph_convs_fused(
                    x, edge_index,
                    edge_params=prm_by_name.get('edge_conv'),
                    mr_params=prm_by_name.get('mr_conv'),
                    lin_params=prm_by_name.get('conv_1x1') if fuse_lin else None)
            out = None
            for w, p, prm in zip(weights, self._prims, self._params):
                if p == 'none':
                    continue                                  # contributes exactly zero
                if p == 'skip_connect':
                    term = x
                elif p == 'conv_1x1':
                    term = graph_out['lin'] if fuse_lin else _op_conv1x1(prm, x, x_0,
                                                                         edge_index)
                elif p == 'edge_conv':
                    term = graph_out['edge']
                elif p == 'mr_conv':
                    term = graph_out['mr']
                else:
                    raise ValueError(p)
                out = w * term if out is None else out + w * term
            return jnp.zeros_like(x) if out is None else out
        else:
            p = self._prims[selected_idx]
            prm = self._params[selected_idx]
            if p == 'edge_conv':
                return graph_convs_fused(x, edge_index, edge_params=prm)['edge']
            if p == 'mr_conv':
                return graph_convs_fused(x, edge_index, mr_params=prm)['mr']
            return _OP_FNS[p](prm, x, x_0, edge_index)


class Cell:
    def __init__(self, key, steps, multiplier, C_prev_prev, C_prev, C, k=9, d=1,
                 switches=None, normal_candidate_flags=None, normal_selected_idxs=None):
        k0, k1, kops = jax.random.split(key, 3)
        # BasicConv assumed: Conv1x1(bias cancelled by BN) -> BatchNorm(train) -> ReLU
        self.preprocess0 = _basic_conv_params(k0, C_prev_prev, C)
        self.preprocess1 = _basic_conv_params(k1, C_prev, C)
        self._steps = steps
        self._multiplier = multiplier
        self._k, self._d = k, d
        self._ops = []
        num_of_edge = 0
        for i in range(self._steps):
            for j in range(2 + i):
                op = MixedOp(jax.random.fold_in(kops, num_of_edge), C, 1, d,
                             switches[num_of_edge],
                             normal_candidate_flags[num_of_edge],
                             normal_selected_idxs[num_of_edge])
                num_of_edge += 1
                self._ops.append(op)

    def __call__(self, s0, s1, weights, selected_idxs, x_0,
                 curstage_selected_idxs, curstage_candidate_flags):
        edge_index = dilated_knn_graph(s0, self._k, self._d)
        s0 = _basic_conv(s0, self.preprocess0)
        s1 = _basic_conv(s1, self.preprocess1)
        states = [s0, s1]
        offset = 0
        none_idx = PRIMITIVES.index('none')
        for i in range(self._steps):
            o_list = []
            for j, h in enumerate(states):
                if selected_idxs[offset + j] == -1:
                    o = self._ops[offset + j](h, edge_index, weights[offset + j], None, x_0)
                    o_list.append(o)
                elif selected_idxs[offset + j] == none_idx:
                    continue
                else:
                    if curstage_candidate_flags[offset + j]:
                        o = self._ops[offset + j](h, edge_index, None, 0, x_0)
                    else:
                        o = self._ops[offset + j](h, edge_index, None,
                                                  curstage_selected_idxs[offset + j], x_0)
                    o_list.append(o)
            s = sum(o_list)
            offset += len(states)
            states.append(s)
        return jnp.concatenate(states[-self._multiplier:], axis=-1)


# ---------------------------------------------------------------------------
if __name__ == "__main__":
    key = jax.random.PRNGKey(0)
    B, N = 2, 16
    C_prev_prev, C_prev, C = 6, 8, 16
    steps, multiplier, k, d = 2, 2, 9, 1
    n_edges = sum(2 + i for i in range(steps))                # = 5

    switches = [[True] * len(PRIMITIVES) for _ in range(n_edges)]
    normal_candidate_flags = [True] * n_edges
    normal_selected_idxs = [-1] * n_edges

    kcell, ks0, ks1, kx0, kw = jax.random.split(key, 5)
    cell = Cell(kcell, steps, multiplier, C_prev_prev, C_prev, C, k=k, d=d,
                switches=switches,
                normal_candidate_flags=normal_candidate_flags,
                normal_selected_idxs=normal_selected_idxs)

    s0 = jax.random.normal(ks0, (B, N, C_prev_prev), jnp.float32)
    s1 = jax.random.normal(ks1, (B, N, C_prev), jnp.float32)
    x_0 = jax.random.normal(kx0, (B, N, 3), jnp.float32)
    w_all = jax.nn.softmax(jax.random.normal(kw, (n_edges, len(PRIMITIVES))), axis=-1)
    weights = [w_all[e] for e in range(n_edges)]

    # exercise all control-flow branches and all fused-kernel variants:
    #   edge0: weighted sum (combined edge+mr+conv1x1 kernel)
    #   edge1: selected edge_conv alone      edge2: 'none' (continue)
    #   edge3: selected mr_conv alone        edge4: candidate-flag branch ('none' op)
    selected_idxs = [-1, 3, 0, 4, 2]
    curstage_candidate_flags = [False, False, False, False, True]
    curstage_selected_idxs = [0, 3, 0, 4, 0]

    out = cell(s0, s1, weights, selected_idxs, x_0,
               curstage_selected_idxs, curstage_candidate_flags)
    out = jax.block_until_ready(out)
    assert out.shape == (B, N, multiplier * C), out.shape
    print("KERNEL_OK")
</pallas_src>

<mosaic_0001>
module attributes {stable_mosaic.version = 11 : i64} {
  func.func @_neg_pdist_kernel(%arg0: i32, %arg1: i32, %arg2: memref<1x16x6xbf16, #tpu.memory_space<vmem>>, %arg3: memref<1x16x6xbf16, #tpu.memory_space<vmem>>, %arg4: memref<1x1x16xf32, #tpu.memory_space<vmem>>, %arg5: memref<1x16x16xf32, #tpu.memory_space<vmem>>) attributes {dimension_semantics = [#tpu.dimension_semantics<parallel>, #tpu.dimension_semantics<parallel>], iteration_bounds = array<i64: 2, 1>, scalar_prefetch = 0 : i64, scratch_operands = 0 : i64, tpu.core_type = #tpu.core_type<tc>, window_params = [{transform_indices = @transform_0, window_bounds = array<i64: 1, 16, 6>}, {transform_indices = @transform_1, window_bounds = array<i64: 1, 16, 6>}, {transform_indices = @transform_2, window_bounds = array<i64: 1, 1, 16>}, {transform_indices = @transform_3, window_bounds = array<i64: 1, 16, 16>}]} {
    %c0 = arith.constant 0 : index
    %c0_0 = arith.constant 0 : index
    %c0_1 = arith.constant 0 : index
    %0 = vector.load %arg2[%c0, %c0_0, %c0_1] : memref<1x16x6xbf16, #tpu.memory_space<vmem>>, vector<1x16x6xbf16>
    %1 = vector.shape_cast %0 : vector<1x16x6xbf16> to vector<16x6xbf16>
    %c0_2 = arith.constant 0 : index
    %c0_3 = arith.constant 0 : index
    %c0_4 = arith.constant 0 : index
    %2 = vector.load %arg3[%c0_2, %c0_3, %c0_4] : memref<1x16x6xbf16, #tpu.memory_space<vmem>>, vector<1x16x6xbf16>
    %3 = vector.shape_cast %2 : vector<1x16x6xbf16> to vector<16x6xbf16>
    %cst = arith.constant dense<0.000000e+00> : vector<16x16xf32>
    %4 = tpu.matmul %1, %3, %cst {dimension_numbers = #tpu.dot_dimension_numbers<[1], [1], [0], [0], [0, 0, 1, 0], [], []>} : vector<16x6xbf16>, vector<16x6xbf16>, vector<16x16xf32> -> vector<16x16xf32>
    %5 = arith.extf %1 : vector<16x6xbf16> to vector<16x6xf32>
    %6 = arith.mulf %5, %5 : vector<16x6xf32>
    %cst_5 = arith.constant dense<0.000000e+00> : vector<16xf32>
    %7 = vector.multi_reduction <add>, %6, %cst_5 [1] : vector<16x6xf32> to vector<16xf32>
    %8 = vector.shape_cast %7 : vector<16xf32> to vector<16x1xf32>
    %cst_6 = arith.constant 2.000000e+00 : f32
    %9 = vector.broadcast %cst_6 : f32 to vector<16x16xf32>
    %10 = arith.mulf %9, %4 : vector<16x16xf32>
    %11 = vector.broadcast %8 : vector<16x1xf32> to vector<16x16xf32>
    %12 = arith.subf %10, %11 : vector<16x16xf32>
    %c0_7 = arith.constant 0 : index
    %c0_8 = arith.constant 0 : index
    %c0_9 = arith.constant 0 : index
    %13 = vector.load %arg4[%c0_7, %c0_8, %c0_9] : memref<1x1x16xf32, #tpu.memory_space<vmem>>, vector<1x1x16xf32>
    %14 = vector.shape_cast %13 : vector<1x1x16xf32> to vector<1x16xf32>
    %15 = vector.broadcast %14 : vector<1x16xf32> to vector<16x16xf32>
    %16 = arith.subf %12, %15 : vector<16x16xf32>
    %c0_10 = arith.constant 0 : index
    %c0_11 = arith.constant 0 : index
    %c0_12 = arith.constant 0 : index
    %17 = vector.load %arg5[%c0_10, %c0_11, %c0_12] : memref<1x16x16xf32, #tpu.memory_space<vmem>>, vector<1x16x16xf32>
    %18 = vector.shape_cast %17 : vector<1x16x16xf32> to vector<16x16xf32>
    %19 = vector.shape_cast %16 : vector<16x16xf32> to vector<1x16x16xf32>
    tpu.vector_store %arg5[%c0_10, %c0_11, %c0_12], %19 {strides = array<i32>} : memref<1x16x16xf32, #tpu.memory_space<vmem>>, vector<1x16x16xf32>,
    return
  }
  func.func @transform_0(%arg0: i32, %arg1: i32) -> (i32, i32, i32) {
    %c0_i32 = arith.constant 0 : i32
    %c0_i32_0 = arith.constant 0 : i32
    return %arg0, %arg1, %c0_i32 : i32, i32, i32
  }
  func.func @transform_1(%arg0: i32, %arg1: i32) -> (i32, i32, i32) {
    %c0_i32 = arith.constant 0 : i32
    %c0_i32_0 = arith.constant 0 : i32
    %c0_i32_1 = arith.constant 0 : i32
    return %arg0, %c0_i32, %c0_i32_0 : i32, i32, i32
  }
  func.func @transform_2(%arg0: i32, %arg1: i32) -> (i32, i32, i32) {
    %c0_i32 = arith.constant 0 : i32
    %c0_i32_0 = arith.constant 0 : i32
    %c0_i32_1 = arith.constant 0 : i32
    return %arg0, %c0_i32, %c0_i32_0 : i32, i32, i32
  }
  func.func @transform_3(%arg0: i32, %arg1: i32) -> (i32, i32, i32) {
    %c0_i32 = arith.constant 0 : i32
    %c0_i32_0 = arith.constant 0 : i32
    return %arg0, %arg1, %c0_i32 : i32, i32, i32
  }
}

</mosaic_0001>

<llo_original>
// kernel: tpu_custom_call.1
$region0: #{tpu_custom_call.1}
  #allocation0 [shape = 'u32[]', space=smem, size = 0x4, offset = 0x4, fixed_abs, tag = 'smem constant byte address 0x4 - core index']
  #allocation1 [shape = 'u32[144,128]{1,0:T(1,128)}', space=vmem, size = 0x12000, scoped, tag = 'internal scratch']
  %s0 = inlined_call_operand.vmem [shape: bf16[2,16,6], index: 0, kind: input, shape index: {}]
  %s1 = inlined_call_operand.vmem [shape: bf16[2,16,6], index: 1, kind: input, shape index: {}]
  %s2 = inlined_call_operand.vmem [shape: f32[2,1,16], index: 2, kind: input, shape index: {}]
  %s3 = inlined_call_operand.hbm [shape: f32[2,16,16], index: 3, kind: output, shape index: {}]
  %s4 = sld [smem:[#allocation0]]
  $region45: #{tpu_custom_call.1} parent=0
    _
  %s6 = ssub.s32 1, %s4
  %s7 = scalar_select 0, %s6, %s4
  $region1: #{tpu_custom_call.1} parent=0
    #allocation2 [shape = 'u8[16384]{0}', space=vmem, size = 0x4000, scoped, tag = 'output window, operand 0']
    #allocation3 [shape = 's32[2]{0}', space=sflag, size = 0x8, scoped, tag = 'scoped memory for tpu_custom_call.1']
    %8 = vsyncpa [#allocation3], 0
    %s9 = scalar_lea.sflag [#allocation3], 1
    %10 = vsyncpa %s9, 0
    loop: start=0, step=1, limit=4
    $region2: #{tpu_custom_call.1} parent=1 // loop_pre_header
      _
    $region3: #{tpu_custom_call.1} parent=1 // loop_header
      %s12 = sphi 0, %s16
      %p13 = scmp.ge.s32.totalorder %s12, 4
      %s19 = sphi 0, %s31
      %s20 = sphi 0, %s27
      %s21 = sphi 0, %s19
      %s22 = sphi 0, %s20
      %s23 = sphi 0, %s21
      %s24 = sphi 0, %s22
      %s36 = sphi 0, %s38
      %s39 = sphi 0, %s36
      %s40 = sphi 0, %s39
      %s56 = sphi 0, %s40
      %s62 = sphi 0, %s64
      %s65 = sphi 0, %s62
      %s66 = sphi 0, %s65
      %s82 = sphi 0, %s66
      %s88 = sphi 0, %s90
      %s91 = sphi 0, %s88
      %s92 = sphi 0, %s91
      %s108 = sphi 0, %s92
      %s116 = sphi 0, %s118
      %s119 = sphi 0, %s116
      %s120 = sphi 0, %s119
      %s136 = sphi 0, %s120
    $region4: #{tpu_custom_call.1} parent=1 // loop_header_branch
      %15 = sbr.rel (%p13) target = $region8
    $region5: #{tpu_custom_call.1} parent=1 // loop_body
      %s17 = ssub.s32 %s12, 1
      %s18 = ssub.s32 %s12, 2
      %s25 = sadd.s32 1, %s20
      %p26 = scmp.ge.s32.totalorder %s25, 1
      %s27 = scalar_select %p26, 0, %s25
      %s28 = sadd.s32 1, %s19
      %s29 = scalar_select %p26, %s28, %s19
      %p30 = scmp.ge.s32.totalorder %s29, 2
      %s31 = scalar_select %p30, 0, %s29
      %s32 = ssub.s32 %s19, %s31
      %s33 = ssub.s32 %s20, %s27
      %s34 = sor.u32 %s32, %s33
      %p35 = scmp.eq.s32.totalorder %s34, 0
      %s37 = sadd.s32 %s36, 1
      %s38 = scalar_select %p35, %s36, %s37
      %p41 = pneg %p35
      %p42 = scmp.eq.s32.totalorder %s12, 1
      %p43 = por %p41, %p42
      %p44 = scmp.ne.s32.totalorder %s36, %s39
      %p45 = scmp.eq.s32.totalorder %s12, 0
      %p46 = por %p44, %p45
      %p47 = scmp.ne.s32.totalorder %s36, %s39
      %p48 = scmp.eq.s32.totalorder %s17, 1
      %p49 = por %p47, %p48
      %p50 = scmp.ne.s32.totalorder %s39, %s40
      %p51 = scmp.eq.s32.totalorder %s17, 0
      %p52 = por %p50, %p51
      %p53 = scmp.ne.s32.totalorder %s39, %s40
      %p54 = scmp.eq.s32.totalorder %s18, 1
      %p55 = por %p53, %p54
      %p57 = scmp.ne.s32.totalorder %s40, %s56
      %p58 = scmp.eq.s32.totalorder %s18, 0
      %p59 = por %p57, %p58
      %s60 = ssub.s32 %s19, %s31
      %p61 = scmp.eq.s32.totalorder %s60, 0
      %s63 = sadd.s32 %s62, 1
      %s64 = scalar_select %p61, %s62, %s63
      %p67 = pneg %p61
      %p68 = scmp.eq.s32.totalorder %s12, 1
      %p69 = por %p67, %p68
      %p70 = scmp.ne.s32.totalorder %s62, %s65
      %p71 = scmp.eq.s32.totalorder %s12, 0
      %p72 = por %p70, %p71
      %p73 = scmp.ne.s32.totalorder %s62, %s65
      %p74 = scmp.eq.s32.totalorder %s17, 1
      %p75 = por %p73, %p74
      %p76 = scmp.ne.s32.totalorder %s65, %s66
      %p77 = scmp.eq.s32.totalorder %s17, 0
      %p78 = por %p76, %p77
      %p79 = scmp.ne.s32.totalorder %s65, %s66
      %p80 = scmp.eq.s32.totalorder %s18, 1
      %p81 = por %p79, %p80
      %p83 = scmp.ne.s32.totalorder %s66, %s82
      %p84 = scmp.eq.s32.totalorder %s18, 0
      %p85 = por %p83, %p84
      %s86 = ssub.s32 %s19, %s31
      %p87 = scmp.eq.s32.totalorder %s86, 0
      %s89 = sadd.s32 %s88, 1
      %s90 = scalar_select %p87, %s88, %s89
      %p93 = pneg %p87
      %p94 = scmp.eq.s32.totalorder %s12, 1
      %p95 = por %p93, %p94
      %p96 = scmp.ne.s32.totalorder %s88, %s91
      %p97 = scmp.eq.s32.totalorder %s12, 0
      %p98 = por %p96, %p97
      %p99 = scmp.ne.s32.totalorder %s88, %s91
      %p100 = scmp.eq.s32.totalorder %s17, 1
      %p101 = por %p99, %p100
      %p102 = scmp.ne.s32.totalorder %s91, %s92
      %p103 = scmp.eq.s32.totalorder %s17, 0
      %p104 = por %p102, %p103
      %p105 = scmp.ne.s32.totalorder %s91, %s92
      %p106 = scmp.eq.s32.totalorder %s18, 1
      %p107 = por %p105, %p106
      %p109 = scmp.ne.s32.totalorder %s92, %s108
      %p110 = scmp.eq.s32.totalorder %s18, 0
      %p111 = por %p109, %p110
      %s112 = ssub.s32 %s19, %s31
      %s113 = ssub.s32 %s20, %s27
      %s114 = sor.u32 %s112, %s113
      %p115 = scmp.eq.s32.totalorder %s114, 0
      %s117 = sadd.s32 %s116, 1
      %s118 = scalar_select %p115, %s116, %s117
      %p121 = pneg %p115
      %p122 = scmp.eq.s32.totalorder %s12, 1
      %p123 = por %p121, %p122
      %p124 = scmp.ne.s32.totalorder %s116, %s119
      %p125 = scmp.eq.s32.totalorder %s12, 0
      %p126 = por %p124, %p125
      %p127 = scmp.ne.s32.totalorder %s116, %s119
      %p128 = scmp.eq.s32.totalorder %s17, 1
      %p129 = por %p127, %p128
      %p130 = scmp.ne.s32.totalorder %s119, %s120
      %p131 = scmp.eq.s32.totalorder %s17, 0
      %p132 = por %p130, %p131
      %p133 = scmp.ne.s32.totalorder %s119, %s120
      %p134 = scmp.eq.s32.totalorder %s18, 1
      %p135 = por %p133, %p134
      %p137 = scmp.ne.s32.totalorder %s120, %s136
      %p138 = scmp.eq.s32.totalorder %s18, 0
      %p139 = por %p137, %p138
      %p140 = scmp.le.s32.totalorder 1, %s12
      %p141 = scmp.lt.s32.totalorder %s12, 3
      %p142 = pnand %p140, %p141
      %p143 = pneg %p142
      // Predicated region
      $region9: #{tpu_custom_call.1} parent=5 // pred_check
        _
      $region10: #{tpu_custom_call.1} parent=5 // pred_check_branch
        %145 = sbr.rel (%p142) target = $region12
      $region11: #{tpu_custom_call.1} parent=5 // pred_region
        %s146 = ssub.s32 %s12, 1
      $region12: #{tpu_custom_call.1} parent=5 // pred_fallthru
        _
      %p147 = scmp.lt.s32.totalorder %s12, 2
      // Predicated region
      $region13: #{tpu_custom_call.1} parent=5 // pred_check
        %p148 = pneg %p147
      $region14: #{tpu_custom_call.1} parent=5 // pred_check_branch
        %150 = sbr.rel (%p148) target = $region16
      $region15: #{tpu_custom_call.1} parent=5 // pred_region
        // Predicated region
        $region17: #{tpu_custom_call.1} parent=15 // pred_check
          %p151 = pneg %p46
        $region18: #{tpu_custom_call.1} parent=15 // pred_check_branch
          %153 = sbr.rel (%p151) target = $region20
        $region19: #{tpu_custom_call.1} parent=15 // pred_region
          %s154 = smul.u32 2, %s20
          %p155 = scmp.lt.s32.totalorder %s19, 1
          %s156 = scalar_select %p155, %s19, 1
          %p157 = scmp.lt.s32.totalorder %s154, 1
          %s158 = scalar_select %p157, %s154, 1
          %s159 = smul.addr %s156, 2
          %s160 = sadd.s32 %s158, %s159
          %s161 = smul.addr %s160, 4
          %s162 = scalar_lea.vmem %s0, %s161
          %s163 = smul.u32 2, %s20
        $region20: #{tpu_custom_call.1} parent=15 // pred_fallthru
          _
        // Predicated region
        $region21: #{tpu_custom_call.1} parent=15 // pred_check
          %p164 = pneg %p72
        $region22: #{tpu_custom_call.1} parent=15 // pred_check_branch
          %166 = sbr.rel (%p164) target = $region24
        $region23: #{tpu_custom_call.1} parent=15 // pred_region
          %p167 = scmp.lt.s32.totalorder %s19, 1
          %s168 = scalar_select %p167, %s19, 1
          %s169 = smul.addr %s168, 2
          %s170 = smul.addr %s169, 4
          %s171 = scalar_lea.vmem %s1, %s170
        $region24: #{tpu_custom_call.1} parent=15 // pred_fallthru
          _
        // Predicated region
        $region25: #{tpu_custom_call.1} parent=15 // pred_check
          %p172 = pneg %p98
        $region26: #{tpu_custom_call.1} parent=15 // pred_check_branch
          %174 = sbr.rel (%p172) target = $region28
        $region27: #{tpu_custom_call.1} parent=15 // pred_region
          %p175 = scmp.lt.s32.totalorder %s19, 1
          %s176 = scalar_select %p175, %s19, 1
          %s177 = scalar_lea.vmem %s2, %s176
        $region28: #{tpu_custom_call.1} parent=15 // pred_fallthru
          _
      $region16: #{tpu_custom_call.1} parent=5 // pred_fallthru
        _
      %p178 = scmp.le.s32.totalorder 1, %s12
      %p179 = scmp.lt.s32.totalorder %s12, 3
      %p180 = pnand %p178, %p179
      %p181 = pneg %p180
      // Predicated region
      $region29: #{tpu_custom_call.1} parent=5 // pred_check
        _
      $region30: #{tpu_custom_call.1} parent=5 // pred_check_branch
        %183 = sbr.rel (%p180) target = $region32
      $region31: #{tpu_custom_call.1} parent=5 // pred_region
        %s184 = ssub.s32 %s12, 1
        %s185 = smul.u32 2, %s22
        %p186 = scmp.lt.s32.totalorder %s21, 1
        %s187 = scalar_select %p186, %s21, 1
        %p188 = scmp.lt.s32.totalorder %s185, 1
        %s189 = scalar_select %p188, %s185, 1
        %s190 = smul.addr %s187, 2
        %s191 = sadd.s32 %s189, %s190
        %s192 = smul.addr %s191, 4
        %s193 = scalar_lea.vmem %s0, %s192
        %p194 = pneg %p52
        %p195 = pneg %p49
        %p196 = scmp.lt.s32.totalorder %s21, 1
        %s197 = scalar_select %p196, %s21, 1
        %s198 = smul.addr %s197, 2
        %s199 = smul.addr %s198, 4
        %s200 = scalar_lea.vmem %s1, %s199
        %p201 = pneg %p78
        %p202 = pneg %p75
        %p203 = scmp.lt.s32.totalorder %s21, 1
        %s204 = scalar_select %p203, %s21, 1
        %s205 = scalar_lea.vmem %s2, %s204
        %p206 = pneg %p104
        %p207 = pneg %p101
        %p208 = pneg %p132
        %p209 = pneg %p129
        %s210 = sand.u32 %s119, 1
        %s211 = scalar_lea.sflag [#allocation3], %s210
        %s212 = sand.u32 %s119, 1
        %s213 = smul.addr %s212, 16
        %s214 = scalar_lea.vmem [#allocation2], %s213
        %s215 = smul.u32 2, %s22
        %p216 = scmp.lt.s32.totalorder %s21, 1
        %s217 = scalar_select %p216, %s21, 1
        %p218 = scmp.lt.s32.totalorder %s215, 1
        %s219 = scalar_select %p218, %s215, 1
        %s220 = smul.addr %s217, 2
        %s221 = sadd.s32 %s219, %s220
        %s222 = smul.addr %s221, 4
        %s223 = scalar_lea.vmem %s0, %s222
        %s224 = smul.u32 2, %s22
        %p225 = scmp.lt.s32.totalorder %s21, 1
        %s226 = scalar_select %p225, %s21, 1
        %s227 = smul.addr %s226, 2
        %s228 = smul.addr %s227, 4
        %s229 = scalar_lea.vmem %s1, %s228
        %p230 = scmp.lt.s32.totalorder %s21, 1
        %s231 = scalar_select %p230, %s21, 1
        %s232 = scalar_lea.vmem %s2, %s231
        %s233 = smul.u32 2, %s22
        %v235 = vld [vmem:[%s223] sm:$0xf]
        %v236 = vld [vmem:[%s223 + $0x4] sm:$0xf]
        %v237 = vld [vmem:[%s229] sm:$0xf]
        %v238 = vld [vmem:[%s229 + $0x4] sm:$0xf]
        %v241 = vunpack.c.l.b16 %v235
        %v242 = vunpack.c.l.b16 %v236
        %v243 = vpack.c.b16 %v242, %v241
        %v246 = vunpack.c.l.b16 %v237
        %v247 = vunpack.c.l.b16 %v238
        %v248 = vpack.c.b16 %v247, %v246
        %vm249 = vcmask 48128
        %v251 = vsel %vm249, %v243, 0
        %v254 = vsel %vm249, %v248, 0
        %256 = vmatprep.subr.bf16.mxu0 0
        %257 = vmatpush1.bf16.xpose.msra.mxu0 %v254
        %258 = vmatprep.subr.bf16.mxu0 0
        %259 = vmatpush1.bf16.xpose.msra.mxu0 0
        %260 = vmatprep.subr.bf16.mxu0 0
        %261 = vmatpush1.bf16.xpose.msra.mxu0 0
        %262 = vmatprep.subr.bf16.mxu0 0
        %263 = vmatpush1.bf16.xpose.msra.mxu0 0
        %264 = vmatprep.subr.bf16.mxu0 0
        %265 = vmatpush1.bf16.xpose.msra.mxu0 0
        %266 = vmatprep.subr.bf16.mxu0 0
        %267 = vmatpush1.bf16.xpose.msra.mxu0 0
        %268 = vmatprep.subr.bf16.mxu0 0
        %269 = vmatpush1.bf16.xpose.msra.mxu0 0
        %270 = vmatprep.subr.bf16.mxu0 0
        %271 = vmatpush1.bf16.xpose.msra.mxu0 0
        %272 = vmatprep.subr.bf16.mxu0 0
        %273 = vmatpush1.bf16.xpose.msra.mxu0 0
        %274 = vmatprep.subr.bf16.mxu0 0
        %275 = vmatpush1.bf16.xpose.msra.mxu0 0
        %276 = vmatprep.subr.bf16.mxu0 0
        %277 = vmatpush1.bf16.xpose.msra.mxu0 0
        %278 = vmatprep.subr.bf16.mxu0 0
        %279 = vmatpush1.bf16.xpose.msra.mxu0 0
        %280 = vmatprep.subr.bf16.mxu0 0
        %281 = vmatpush1.bf16.xpose.msra.mxu0 0
        %282 = vmatprep.subr.bf16.mxu0 0
        %283 = vmatpush1.bf16.xpose.msra.mxu0 0
        %284 = vmatprep.subr.bf16.mxu0 0
        %285 = vmatpush1.bf16.xpose.msra.mxu0 0
        %286 = vmatprep.subr.bf16.mxu0 0
        %287 = vmatpush1.bf16.xpose.msra.mxu0 0
        %288 = vmatprep.mubr.bf16.mxu0 0
        %289 = vmatmul.mubr.bf16.gmra.mrb[0].mxu0 %v251
        %v290 = vpop.f32.mrb[0].mxu0
        %v291 = vadd.f32 0.0, %v290
        %v292 = vpop.f32.mrb[0].mxu0
        %v293 = vpop.f32.mrb[0].mxu0
        %v294 = vadd.f32 0.0, %v293
        %v295 = vpop.f32.mrb[0].mxu0
        %296 = vdwg.mxu0
        %v297 = vunpack.c.l.bf16 %v235
        %v298 = vunpack.c.l.bf16 %v236
        %v299 = vmul.f32 %v297, %v297
        %v300 = vmul.f32 %v298, %v298
        %v301 = vsel %vm249, %v299, 0.0
        %302 = vadd.xlane.f32.xlu0 %v301
        %v303 = vpop.xlane.xlu0 %302
        %v304 = vsel %vm249, %v300, 0.0
        %305 = vadd.xlane.f32.xlu0 %v304
        %v306 = vpop.xlane.xlu0 %305
        %v307 = vmul.f32 %v291, 2.0
        %v308 = vmul.f32 %v294, 2.0
        %v309 = vsub.f32 %v307, %v303
        %v310 = vsub.f32 %v308, %v306
        %v311 = vld [vmem:[%s232] sm:$0x1]
        %v313 = vlaneseq
        %v314 = vshrl.u32 %v313, 7
        %v315 = vsub.s32 0, %v314
        %v316 = vrot.slane %v311, %v315
        %v318 = vsub.f32 %v309, %v316
        %v319 = vsub.f32 %v310, %v316
        %vm320 = vcmask 130048
        %321 = vst.msk [vmem:[%s214] sm:$0xff] %vm320, %v318
        %322 = vst.msk [vmem:[%s214 + $0x8] sm:$0xff] %vm320, %v319
        %s323 = sand.u32 %s119, 1
        %s324 = scalar_lea.sflag [#allocation3], %s323
        %s325 = sand.u32 %s119, 1
        %s326 = smul.addr %s325, 16
        %s327 = scalar_lea.vmem [#allocation2], %s326
        // Predicated region
        $region33: #{tpu_custom_call.1} parent=31 // pred_check
          %p328 = pneg %p129
        $region34: #{tpu_custom_call.1} parent=31 // pred_check_branch
          %330 = sbr.rel (%p328) target = $region36
        $region35: #{tpu_custom_call.1} parent=31 // pred_region
          %s331 = smul.u32 2, %s22
          %s333 = ssub.s32 256, 256
          %334 = vsyncadd %s324, %s333
          %s335 = smul.addr %s21, 2
          %s336 = sadd.s32 %s331, %s335
          %s337 = smul.addr %s336, 128
          %s338 = scalar_lea.hbm %s3, %s337
          %s339 = sshll.u32 %s327, 4
          %s340 = int_to_ptr.vmem [resolvable:$true] %s339
          %345 = dma.vmem_to_hbm [thread:$0]  %s340, 256, %s338, %s324, 128, 128, 8
        $region36: #{tpu_custom_call.1} parent=31 // pred_fallthru
          _
      $region32: #{tpu_custom_call.1} parent=5 // pred_fallthru
        _
      %p346 = scmp.le.s32.totalorder 2, %s12
      // Predicated region
      $region37: #{tpu_custom_call.1} parent=5 // pred_check
        %p347 = pneg %p346
      $region38: #{tpu_custom_call.1} parent=5 // pred_check_branch
        %349 = sbr.rel (%p347) target = $region40
      $region39: #{tpu_custom_call.1} parent=5 // pred_region
        %s350 = ssub.s32 %s12, 2
        // Predicated region
        $region41: #{tpu_custom_call.1} parent=39 // pred_check
          %p351 = pneg %p135
        $region42: #{tpu_custom_call.1} parent=39 // pred_check_branch
          %353 = sbr.rel (%p351) target = $region44
        $region43: #{tpu_custom_call.1} parent=39 // pred_region
          %s354 = sand.u32 %s120, 1
          %s355 = scalar_lea.sflag [#allocation3], %s354
          %s356 = sand.u32 %s120, 1
          %s357 = smul.addr %s356, 16
          %s358 = scalar_lea.vmem [#allocation2], %s357
          %359 = dma.done %s355, 256
        $region44: #{tpu_custom_call.1} parent=39 // pred_fallthru
          _
      $region40: #{tpu_custom_call.1} parent=5 // pred_fallthru
        _
    $region6: #{tpu_custom_call.1} parent=1 // loop_footer
      %s16 = sadd.s32 1, %s12
    $region7: #{tpu_custom_call.1} parent=1 // loop_footer_branch
      %11 = sbr.rel target = $region3
    $region8: #{tpu_custom_call.1} parent=1 // loop_exit
      _
    %360 = vsyncpa [#allocation3], 1
    %s361 = scalar_lea.sflag [#allocation3], 1
    %362 = vsyncpa %s361, 1

</llo_original>
